<compile_context>
chip_gen: v7x
topology: tpu7x:2x2x1
jax: 0.10.0
libtpu: 0.0.40
codegen_flags: <defaults>
</compile_context>

<pallas_src>
import functools

import numpy as np
import jax
import jax.numpy as jnp
from jax import lax
from jax.experimental import pallas as pl
from jax.experimental.pallas import tpu as pltpu


# --------------------------------------------------------------------- kernel
def _make_kernel(L_total: int, TL: int):
    """Build the fused GAP + conv1(+BN) + conv2 kernel for static (L, tile)."""
    # TL is either a multiple of 128 (L >= 128) or equal to L (L < 128).
    n_chunks = TL // 128 if (TL >= 128 and TL % 128 == 0) else 0
    need_mask = (L_total % TL) != 0          # partial tail tile along L
    inv_L = 1.0 / float(L_total)             # mean uses FULL L, not tile length

    def kernel(x_ref, w1_ref, b1_ref, w2t_ref, b2_ref, o_ref, acc_ref):
        # grid = (B, num_l_tiles); axis 1 is the L reduction ("arbitrary").
        k = pl.program_id(1)

        @pl.when(k == 0)
        def _init():
            acc_ref[...] = jnp.zeros_like(acc_ref)

        # ---- streaming phase: lane-aligned partial-sum accumulation (VPU) ----
        if n_chunks:
            base = k * TL
            def load_chunk(j):
                # Static, lane-tile-aligned 128-wide slice of the x block;
                # cast per-chunk (keeps f32 pressure at chunk size).
                c = x_ref[:, :, j * 128:(j + 1) * 128].astype(jnp.float32)
                if need_mask:
                    lane = lax.broadcasted_iota(jnp.int32, c.shape, 2)
                    c = jnp.where(base + j * 128 + lane < L_total, c, 0.0)
                return c

            partial = load_chunk(0)
            for j in range(1, n_chunks):          # static unrolled VPU adds
                partial = partial + load_chunk(j)
            acc_ref[...] += partial
        else:
            # L < 128: single tile covering the whole (full) L dimension.
            acc_ref[...] += x_ref[...].astype(jnp.float32)

        # ---- finalize once: lane reduce + mean + two matmuls + store ----------
        @pl.when(k == pl.num_programs(1) - 1)
        def _finalize():
            gap = jnp.sum(acc_ref[...], axis=-1) * inv_L            # (1, C)

            # Conv1d(C, Cr, 1) with BatchNorm folded in:
            # gap (1, C) · w1f (Cr, C), contracting the C axes  -> (1, Cr)
            h = lax.dot_general(
                gap, w1_ref[...], (((1,), (1,)), ((), ())),
                preferred_element_type=jnp.float32) + b1_ref[...]

            # Conv1d(Cr, C, 1):  h (1, Cr) @ w2t (Cr, C) -> (1, C)
            out = jnp.dot(h, w2t_ref[...],
                          preferred_element_type=jnp.float32) + b2_ref[...]

            o_ref[0] = out.astype(o_ref.dtype)                      # lane-dense

    return kernel


def _choose_l_tile(L: int, C: int, itemsize: int,
                   x_block_budget: int = 4 * 1024 * 1024) -> int:
    """Largest multiple-of-128 L tile whose double-buffered x block fits budget."""
    if L < 128:
        return L                              # full (small) L in one tile
    cap = max(128, (x_block_budget // (2 * C * itemsize)) // 128 * 128)
    cap = min(cap, 2048)
    return int(min(cap, (L // 128) * 128))    # never larger than L


# -------------------------------------------------------------------- wrapper
def channel_attention(x, prepared):
    """x: (B, C, L). `prepared` from prepare_params(). Returns (B, C, 1)."""
    B, C, L = x.shape
    Cr = prepared['w1f'].shape[0]
    itemsize = x.dtype.itemsize

    TL = _choose_l_tile(L, C, itemsize)
    slab = 128 if TL >= 128 else TL
    num_l = pl.cdiv(L, TL)

    # Scoped-VMEM budget: x double-buffered + weights + scratch + output, 2x slack.
    x_block_bytes = C * TL * itemsize
    w_bytes = 2 * (Cr * C * 4) + (Cr + C) * 4
    scratch_bytes = C * slab * 4
    need = 2 * x_block_bytes + 2 * w_bytes + scratch_bytes + 2 * C * itemsize
    vmem_limit = int(min(64 * 1024 * 1024, max(8 * 1024 * 1024, 2 * need)))

    cost = pl.CostEstimate(
        flops=int(2 * B * C * Cr * 2 + B * C * L),        # 2 matmuls + GAP adds
        transcendentals=0,
        bytes_accessed=int(B * C * L * itemsize + 2 * Cr * C * 4
                           + (Cr + C) * 4 + B * C * itemsize),
    )

    out3 = pl.pallas_call(
        _make_kernel(L, TL),
        out_shape=jax.ShapeDtypeStruct((B, 1, C), x.dtype),
        grid_spec=pltpu.PrefetchScalarGridSpec(
            num_scalar_prefetch=0,
            grid=(B, num_l),
            in_specs=[
                pl.BlockSpec((1, C, TL), lambda b, k: (b, 0, k)),   # x (streamed)
                pl.BlockSpec((Cr, C), lambda b, k: (0, 0)),         # w1 (BN folded)
                pl.BlockSpec((1, Cr), lambda b, k: (0, 0)),         # b1 (BN folded)
                pl.BlockSpec((Cr, C), lambda b, k: (0, 0)),         # w2^T
                pl.BlockSpec((1, C), lambda b, k: (0, 0)),          # b2
            ],
            out_specs=pl.BlockSpec((1, 1, C), lambda b, k: (b, 0, 0)),
            scratch_shapes=[pltpu.VMEM((1, C, slab), jnp.float32)],  # GAP partial sums
        ),
        compiler_params=pltpu.CompilerParams(
            dimension_semantics=("parallel", "arbitrary"),
            vmem_limit_bytes=vmem_limit,
        ),
        cost_estimate=cost,
    )(x, prepared['w1f'], prepared['b1f'], prepared['w2t'], prepared['b2'])

    return out3[:, 0, :, None]                                   # (B, C, 1)


channel_attention_jit = jax.jit(channel_attention)


# --------------------------------------------------------------- param prep
def prepare_params(p, eps: float = 1e-5):
    """Hoisted, done once: fold inference BatchNorm into conv1 and pre-transpose
    conv2 weight so the per-call wrapper does zero host-side reshapes."""
    scale = p['bn_g'] * lax.rsqrt(p['bn_var'] + eps)              # (Cr,)
    w1f = p['w1'] * scale[:, None]                                # (Cr, C)
    b1f = (p['b1'] - p['bn_mean']) * scale + p['bn_b']            # (Cr,)
    return {
        'w1f': jnp.asarray(w1f, jnp.float32),
        'b1f': jnp.asarray(b1f, jnp.float32).reshape(1, -1),
        'w2t': jnp.asarray(p['w2'].T, jnp.float32),               # (Cr, C)
        'b2': jnp.asarray(p['b2'], jnp.float32).reshape(1, -1),
    }


# --------------------------------------------------------------- pure-JAX ref
def reference_forward(x, p):
    gap = jnp.mean(x, axis=-1)                                            # (B, C)
    h = gap @ p['w1'].T + p['b1']                                         # (B, Cr)
    h = (h - p['bn_mean']) * lax.rsqrt(p['bn_var'] + 1e-5) * p['bn_g'] + p['bn_b']
    out = h @ p['w2'].T + p['b2']                                         # (B, C)
    return out[..., None]                                                 # (B, C, 1)


# ------------------------------------------------------------------ params
def init_params(key, dim, reduction):
    cr = dim // reduction
    ks = jax.random.split(key, 8)
    s = 0.1
    p = {}
    # Conv1d weights stored with the kernel-size-1 axis squeezed: (out, in)
    p['w1'] = s * jax.random.normal(ks[0], (cr, dim), jnp.float32)
    p['b1'] = s * jax.random.normal(ks[1], (cr,), jnp.float32)
    p['w2'] = s * jax.random.normal(ks[2], (dim, cr), jnp.float32)
    p['b2'] = s * jax.random.normal(ks[3], (dim,), jnp.float32)
    # BatchNorm1d(cr) inference parameters
    p['bn_g'] = 1.0 + 0.05 * jax.random.normal(ks[4], (cr,), jnp.float32)
    p['bn_b'] = 0.05 * jax.random.normal(ks[5], (cr,), jnp.float32)
    p['bn_mean'] = 0.05 * jax.random.normal(ks[6], (cr,), jnp.float32)
    p['bn_var'] = 0.5 + jax.random.uniform(ks[7], (cr,), jnp.float32)     # > 0
    return p


# -------------------------------------------------------------------- main
if __name__ == "__main__":
    dim, reduction = 64, 8          # channels / reduction -> hidden = 8
    B, L = 2, 16                    # batch, sequence length

    key = jax.random.PRNGKey(0)
    k_x, k_p = jax.random.split(key)
    x = jax.random.normal(k_x, (B, dim, L), jnp.float32)
    params = init_params(k_p, dim, reduction)
    prepared = prepare_params(params)     # BN fold + weight transpose: once

    out = jax.block_until_ready(channel_attention_jit(x, prepared))
    ref = jax.block_until_ready(reference_forward(x, params))

    np.testing.assert_allclose(np.asarray(out), np.asarray(ref),
                               rtol=1e-5, atol=1e-5)
    assert out.shape == (B, dim, 1)

    print("KERNEL_OK")
</pallas_src>

<mosaic_0001>
module attributes {stable_mosaic.version = 11 : i64} {
  func.func @kernel(%arg0: i32, %arg1: i32, %arg2: memref<1x64x16xf32, #tpu.memory_space<vmem>>, %arg3: memref<8x64xf32, #tpu.memory_space<vmem>>, %arg4: memref<1x8xf32, #tpu.memory_space<vmem>>, %arg5: memref<8x64xf32, #tpu.memory_space<vmem>>, %arg6: memref<1x64xf32, #tpu.memory_space<vmem>>, %arg7: memref<1x1x64xf32, #tpu.memory_space<vmem>>, %arg8: memref<1x64x16xf32, #tpu.memory_space<vmem>>) attributes {dimension_semantics = [#tpu.dimension_semantics<parallel>, #tpu.dimension_semantics<arbitrary>], iteration_bounds = array<i64: 2, 1>, scalar_prefetch = 0 : i64, scratch_operands = 1 : i64, tpu.core_type = #tpu.core_type<tc>, window_params = [{transform_indices = @transform_0, window_bounds = array<i64: 1, 64, 16>}, {pipeline_mode = #tpu.pipeline_mode<synchronous>, transform_indices = @transform_1, window_bounds = array<i64: 8, 64>}, {pipeline_mode = #tpu.pipeline_mode<synchronous>, transform_indices = @transform_2, window_bounds = array<i64: 1, 8>}, {pipeline_mode = #tpu.pipeline_mode<synchronous>, transform_indices = @transform_3, window_bounds = array<i64: 8, 64>}, {pipeline_mode = #tpu.pipeline_mode<synchronous>, transform_indices = @transform_4, window_bounds = array<i64: 1, 64>}, {transform_indices = @transform_5, window_bounds = array<i64: 1, 1, 64>}]} {
    %c0_i32 = arith.constant 0 : i32
    %0 = arith.cmpi eq, %arg1, %c0_i32 : i32
    %1 = arith.extui %0 : i1 to i32
    %c0_i32_0 = arith.constant 0 : i32
    %2 = arith.cmpi ne, %1, %c0_i32_0 : i32
    scf.if %2 {
      %cst = arith.constant 0.000000e+00 : f32
      %10 = vector.broadcast %cst : f32 to vector<1x64x16xf32>
      %c0_11 = arith.constant 0 : index
      %c0_12 = arith.constant 0 : index
      %c0_13 = arith.constant 0 : index
      %11 = vector.load %arg8[%c0_11, %c0_12, %c0_13] : memref<1x64x16xf32, #tpu.memory_space<vmem>>, vector<1x64x16xf32>
      tpu.vector_store %arg8[%c0_11, %c0_12, %c0_13], %10 {strides = array<i32>} : memref<1x64x16xf32, #tpu.memory_space<vmem>>, vector<1x64x16xf32>,
    } else {
    }
    %c0 = arith.constant 0 : index
    %c0_1 = arith.constant 0 : index
    %c0_2 = arith.constant 0 : index
    %3 = vector.load %arg8[%c0, %c0_1, %c0_2] : memref<1x64x16xf32, #tpu.memory_space<vmem>>, vector<1x64x16xf32>
    %c0_3 = arith.constant 0 : index
    %c0_4 = arith.constant 0 : index
    %c0_5 = arith.constant 0 : index
    %4 = vector.load %arg2[%c0_3, %c0_4, %c0_5] : memref<1x64x16xf32, #tpu.memory_space<vmem>>, vector<1x64x16xf32>
    %5 = arith.addf %3, %4 : vector<1x64x16xf32>
    %c0_6 = arith.constant 0 : index
    %c0_7 = arith.constant 0 : index
    %c0_8 = arith.constant 0 : index
    %6 = vector.load %arg8[%c0_6, %c0_7, %c0_8] : memref<1x64x16xf32, #tpu.memory_space<vmem>>, vector<1x64x16xf32>
    tpu.vector_store %arg8[%c0_6, %c0_7, %c0_8], %5 {strides = array<i32>} : memref<1x64x16xf32, #tpu.memory_space<vmem>>, vector<1x64x16xf32>,
    %c0_i32_9 = arith.constant 0 : i32
    %7 = arith.cmpi eq, %arg1, %c0_i32_9 : i32
    %8 = arith.extui %7 : i1 to i32
    %c0_i32_10 = arith.constant 0 : i32
    %9 = arith.cmpi ne, %8, %c0_i32_10 : i32
    scf.if %9 {
      %c0_11 = arith.constant 0 : index
      %c0_12 = arith.constant 0 : index
      %c0_13 = arith.constant 0 : index
      %10 = vector.load %arg8[%c0_11, %c0_12, %c0_13] : memref<1x64x16xf32, #tpu.memory_space<vmem>>, vector<1x64x16xf32>
      %cst = arith.constant dense<0.000000e+00> : vector<1x64xf32>
      %11 = vector.multi_reduction <add>, %10, %cst [2] : vector<1x64x16xf32> to vector<1x64xf32>
      %cst_14 = arith.constant 6.250000e-02 : f32
      %12 = vector.broadcast %cst_14 : f32 to vector<1x64xf32>
      %13 = arith.mulf %11, %12 : vector<1x64xf32>
      %c0_15 = arith.constant 0 : index
      %c0_16 = arith.constant 0 : index
      %14 = vector.load %arg3[%c0_15, %c0_16] : memref<8x64xf32, #tpu.memory_space<vmem>>, vector<8x64xf32>
      %cst_17 = arith.constant dense<0.000000e+00> : vector<1x8xf32>
      %15 = tpu.matmul %13, %14, %cst_17 {dimension_numbers = #tpu.dot_dimension_numbers<[1], [1], [0], [0], [0, 0, 1, 0], [], []>} : vector<1x64xf32>, vector<8x64xf32>, vector<1x8xf32> -> vector<1x8xf32>
      %c0_18 = arith.constant 0 : index
      %c0_19 = arith.constant 0 : index
      %16 = vector.load %arg4[%c0_18, %c0_19] : memref<1x8xf32, #tpu.memory_space<vmem>>, vector<1x8xf32>
      %17 = arith.addf %15, %16 : vector<1x8xf32>
      %c0_20 = arith.constant 0 : index
      %c0_21 = arith.constant 0 : index
      %18 = vector.load %arg5[%c0_20, %c0_21] : memref<8x64xf32, #tpu.memory_space<vmem>>, vector<8x64xf32>
      %cst_22 = arith.constant dense<0.000000e+00> : vector<1x64xf32>
      %19 = tpu.matmul %17, %18, %cst_22 {dimension_numbers = #tpu.dot_dimension_numbers<[1], [0], [0], [1], [0, 0, 1, 1], [], []>} : vector<1x8xf32>, vector<8x64xf32>, vector<1x64xf32> -> vector<1x64xf32>
      %c0_23 = arith.constant 0 : index
      %c0_24 = arith.constant 0 : index
      %20 = vector.load %arg6[%c0_23, %c0_24] : memref<1x64xf32, #tpu.memory_space<vmem>>, vector<1x64xf32>
      %21 = arith.addf %19, %20 : vector<1x64xf32>
      %c0_25 = arith.constant 0 : index
      %c0_26 = arith.constant 0 : index
      %c0_27 = arith.constant 0 : index
      %22 = vector.load %arg7[%c0_25, %c0_26, %c0_27] : memref<1x1x64xf32, #tpu.memory_space<vmem>>, vector<1x1x64xf32>
      %23 = vector.shape_cast %22 : vector<1x1x64xf32> to vector<1x64xf32>
      %24 = vector.shape_cast %21 : vector<1x64xf32> to vector<1x1x64xf32>
      tpu.vector_store %arg7[%c0_25, %c0_26, %c0_27], %24 {strides = array<i32>} : memref<1x1x64xf32, #tpu.memory_space<vmem>>, vector<1x1x64xf32>,
    } else {
    }
    return
  }
  func.func @transform_0(%arg0: i32, %arg1: i32) -> (i32, i32, i32) {
    %c0_i32 = arith.constant 0 : i32
    %c0_i32_0 = arith.constant 0 : i32
    return %arg0, %c0_i32, %arg1 : i32, i32, i32
  }
  func.func @transform_1(%arg0: i32, %arg1: i32) -> (i32, i32) {
    %c0_i32 = arith.constant 0 : i32
    %c0_i32_0 = arith.constant 0 : i32
    %c0_i32_1 = arith.constant 0 : i32
    return %c0_i32, %c0_i32_0 : i32, i32
  }
  func.func @transform_2(%arg0: i32, %arg1: i32) -> (i32, i32) {
    %c0_i32 = arith.constant 0 : i32
    %c0_i32_0 = arith.constant 0 : i32
    %c0_i32_1 = arith.constant 0 : i32
    return %c0_i32, %c0_i32_0 : i32, i32
  }
  func.func @transform_3(%arg0: i32, %arg1: i32) -> (i32, i32) {
    %c0_i32 = arith.constant 0 : i32
    %c0_i32_0 = arith.constant 0 : i32
    %c0_i32_1 = arith.constant 0 : i32
    return %c0_i32, %c0_i32_0 : i32, i32
  }
  func.func @transform_4(%arg0: i32, %arg1: i32) -> (i32, i32) {
    %c0_i32 = arith.constant 0 : i32
    %c0_i32_0 = arith.constant 0 : i32
    %c0_i32_1 = arith.constant 0 : i32
    return %c0_i32, %c0_i32_0 : i32, i32
  }
  func.func @transform_5(%arg0: i32, %arg1: i32) -> (i32, i32, i32) {
    %c0_i32 = arith.constant 0 : i32
    %c0_i32_0 = arith.constant 0 : i32
    %c0_i32_1 = arith.constant 0 : i32
    return %arg0, %c0_i32, %c0_i32_0 : i32, i32, i32
  }
}

</mosaic_0001>

<llo_original>
// kernel: channel_attention.1
$region0: #{channel_attention.1}
  #allocation0 [shape = 'u32[]', space=smem, size = 0x4, offset = 0x4, fixed_abs, tag = 'smem constant byte address 0x4 - core index']
  #allocation1 [shape = 'u32[144,128]{1,0:T(1,128)}', space=vmem, size = 0x12000, scoped, tag = 'internal scratch']
  #allocation2 [shape = 'f32[1,64,16]{2,1,0:T(8,128)}', space=vmem, size = 0x8000, scoped, tag = 'scratch operand']
  %s0 = inlined_call_operand.vmem [shape: f32[2,64,16], index: 0, kind: input, shape index: {}]
  %s1 = inlined_call_operand.vmem [shape: f32[8,64], index: 1, kind: input, shape index: {}]
  %s2 = inlined_call_operand.vmem [shape: f32[1,8], index: 2, kind: input, shape index: {}]
  %s3 = inlined_call_operand.vmem [shape: f32[8,64], index: 3, kind: input, shape index: {}]
  %s4 = inlined_call_operand.vmem [shape: f32[1,64], index: 4, kind: input, shape index: {}]
  %s5 = inlined_call_operand.hbm [shape: f32[2,1,64], index: 5, kind: output, shape index: {}]
  %s6 = sld [smem:[#allocation0]]
  $region61: #{channel_attention.1} parent=0
    _
  %s8 = ssub.s32 1, %s6
  %s9 = scalar_select 0, %s8, %s6
  $region1: #{channel_attention.1} parent=0
    #allocation3 [shape = 'u8[1024]{0}', space=vmem, size = 0x400, scoped, tag = 'output window, operand 0']
    #allocation4 [shape = 's32[2]{0}', space=sflag, size = 0x8, scoped, tag = 'scoped memory for channel_attention.1']
    %10 = vsyncpa [#allocation4], 0
    %s11 = scalar_lea.sflag [#allocation4], 1
    %12 = vsyncpa %s11, 0
    loop: start=0, step=1, limit=4
    $region2: #{channel_attention.1} parent=1 // loop_pre_header
      _
    $region3: #{channel_attention.1} parent=1 // loop_header
      %s14 = sphi 0, %s18
      %p15 = scmp.ge.s32.totalorder %s14, 4
      %s21 = sphi 0, %s33
      %s22 = sphi 0, %s29
      %s23 = sphi 0, %s21
      %s24 = sphi 0, %s22
      %s25 = sphi 0, %s23
      %s26 = sphi 0, %s24
      %s38 = sphi 0, %s40
      %s41 = sphi 0, %s38
      %s42 = sphi 0, %s41
      %s58 = sphi 0, %s42
      %s62 = sphi 0, %s62
      %s64 = sphi 0, %s62
      %s65 = sphi 0, %s64
      %s79 = sphi 0, %s65
      %s83 = sphi 0, %s83
      %s85 = sphi 0, %s83
      %s86 = sphi 0, %s85
      %s100 = sphi 0, %s86
      %s104 = sphi 0, %s104
      %s106 = sphi 0, %s104
      %s107 = sphi 0, %s106
      %s121 = sphi 0, %s107
      %s125 = sphi 0, %s125
      %s127 = sphi 0, %s125
      %s128 = sphi 0, %s127
      %s142 = sphi 0, %s128
      %s148 = sphi 0, %s150
      %s151 = sphi 0, %s148
      %s152 = sphi 0, %s151
      %s168 = sphi 0, %s152
    $region4: #{channel_attention.1} parent=1 // loop_header_branch
      %17 = sbr.rel (%p15) target = $region8
    $region5: #{channel_attention.1} parent=1 // loop_body
      %s19 = ssub.s32 %s14, 1
      %s20 = ssub.s32 %s14, 2
      %s27 = sadd.s32 1, %s22
      %p28 = scmp.ge.s32.totalorder %s27, 1
      %s29 = scalar_select %p28, 0, %s27
      %s30 = sadd.s32 1, %s21
      %s31 = scalar_select %p28, %s30, %s21
      %p32 = scmp.ge.s32.totalorder %s31, 2
      %s33 = scalar_select %p32, 0, %s31
      %s34 = ssub.s32 %s21, %s33
      %s35 = ssub.s32 %s22, %s29
      %s36 = sor.u32 %s34, %s35
      %p37 = scmp.eq.s32.totalorder %s36, 0
      %s39 = sadd.s32 %s38, 1
      %s40 = scalar_select %p37, %s38, %s39
      %p43 = pneg %p37
      %p44 = scmp.eq.s32.totalorder %s14, 1
      %p45 = por %p43, %p44
      %p46 = scmp.ne.s32.totalorder %s38, %s41
      %p47 = scmp.eq.s32.totalorder %s14, 0
      %p48 = por %p46, %p47
      %p49 = scmp.ne.s32.totalorder %s38, %s41
      %p50 = scmp.eq.s32.totalorder %s19, 1
      %p51 = por %p49, %p50
      %p52 = scmp.ne.s32.totalorder %s41, %s42
      %p53 = scmp.eq.s32.totalorder %s19, 0
      %p54 = por %p52, %p53
      %p55 = scmp.ne.s32.totalorder %s41, %s42
      %p56 = scmp.eq.s32.totalorder %s20, 1
      %p57 = por %p55, %p56
      %p59 = scmp.ne.s32.totalorder %s42, %s58
      %p60 = scmp.eq.s32.totalorder %s20, 0
      %p61 = por %p59, %p60
      %s63 = sadd.s32 %s62, 1
      %p66 = scmp.eq.s32.totalorder %s14, 1
      %p67 = scmp.ne.s32.totalorder %s62, %s64
      %p68 = scmp.eq.s32.totalorder %s14, 0
      %p69 = por %p67, %p68
      %p70 = scmp.ne.s32.totalorder %s62, %s64
      %p71 = scmp.eq.s32.totalorder %s19, 1
      %p72 = por %p70, %p71
      %p73 = scmp.ne.s32.totalorder %s64, %s65
      %p74 = scmp.eq.s32.totalorder %s19, 0
      %p75 = por %p73, %p74
      %p76 = scmp.ne.s32.totalorder %s64, %s65
      %p77 = scmp.eq.s32.totalorder %s20, 1
      %p78 = por %p76, %p77
      %p80 = scmp.ne.s32.totalorder %s65, %s79
      %p81 = scmp.eq.s32.totalorder %s20, 0
      %p82 = por %p80, %p81
      %s84 = sadd.s32 %s83, 1
      %p87 = scmp.eq.s32.totalorder %s14, 1
      %p88 = scmp.ne.s32.totalorder %s83, %s85
      %p89 = scmp.eq.s32.totalorder %s14, 0
      %p90 = por %p88, %p89
      %p91 = scmp.ne.s32.totalorder %s83, %s85
      %p92 = scmp.eq.s32.totalorder %s19, 1
      %p93 = por %p91, %p92
      %p94 = scmp.ne.s32.totalorder %s85, %s86
      %p95 = scmp.eq.s32.totalorder %s19, 0
      %p96 = por %p94, %p95
      %p97 = scmp.ne.s32.totalorder %s85, %s86
      %p98 = scmp.eq.s32.totalorder %s20, 1
      %p99 = por %p97, %p98
      %p101 = scmp.ne.s32.totalorder %s86, %s100
      %p102 = scmp.eq.s32.totalorder %s20, 0
      %p103 = por %p101, %p102
      %s105 = sadd.s32 %s104, 1
      %p108 = scmp.eq.s32.totalorder %s14, 1
      %p109 = scmp.ne.s32.totalorder %s104, %s106
      %p110 = scmp.eq.s32.totalorder %s14, 0
      %p111 = por %p109, %p110
      %p112 = scmp.ne.s32.totalorder %s104, %s106
      %p113 = scmp.eq.s32.totalorder %s19, 1
      %p114 = por %p112, %p113
      %p115 = scmp.ne.s32.totalorder %s106, %s107
      %p116 = scmp.eq.s32.totalorder %s19, 0
      %p117 = por %p115, %p116
      %p118 = scmp.ne.s32.totalorder %s106, %s107
      %p119 = scmp.eq.s32.totalorder %s20, 1
      %p120 = por %p118, %p119
      %p122 = scmp.ne.s32.totalorder %s107, %s121
      %p123 = scmp.eq.s32.totalorder %s20, 0
      %p124 = por %p122, %p123
      %s126 = sadd.s32 %s125, 1
      %p129 = scmp.eq.s32.totalorder %s14, 1
      %p130 = scmp.ne.s32.totalorder %s125, %s127
      %p131 = scmp.eq.s32.totalorder %s14, 0
      %p132 = por %p130, %p131
      %p133 = scmp.ne.s32.totalorder %s125, %s127
      %p134 = scmp.eq.s32.totalorder %s19, 1
      %p135 = por %p133, %p134
      %p136 = scmp.ne.s32.totalorder %s127, %s128
      %p137 = scmp.eq.s32.totalorder %s19, 0
      %p138 = por %p136, %p137
      %p139 = scmp.ne.s32.totalorder %s127, %s128
      %p140 = scmp.eq.s32.totalorder %s20, 1
      %p141 = por %p139, %p140
      %p143 = scmp.ne.s32.totalorder %s128, %s142
      %p144 = scmp.eq.s32.totalorder %s20, 0
      %p145 = por %p143, %p144
      %s146 = ssub.s32 %s21, %s33
      %p147 = scmp.eq.s32.totalorder %s146, 0
      %s149 = sadd.s32 %s148, 1
      %s150 = scalar_select %p147, %s148, %s149
      %p153 = pneg %p147
      %p154 = scmp.eq.s32.totalorder %s14, 1
      %p155 = por %p153, %p154
      %p156 = scmp.ne.s32.totalorder %s148, %s151
      %p157 = scmp.eq.s32.totalorder %s14, 0
      %p158 = por %p156, %p157
      %p159 = scmp.ne.s32.totalorder %s148, %s151
      %p160 = scmp.eq.s32.totalorder %s19, 1
      %p161 = por %p159, %p160
      %p162 = scmp.ne.s32.totalorder %s151, %s152
      %p163 = scmp.eq.s32.totalorder %s19, 0
      %p164 = por %p162, %p163
      %p165 = scmp.ne.s32.totalorder %s151, %s152
      %p166 = scmp.eq.s32.totalorder %s20, 1
      %p167 = por %p165, %p166
      %p169 = scmp.ne.s32.totalorder %s152, %s168
      %p170 = scmp.eq.s32.totalorder %s20, 0
      %p171 = por %p169, %p170
      %p172 = scmp.le.s32.totalorder 1, %s14
      %p173 = scmp.lt.s32.totalorder %s14, 3
      %p174 = pnand %p172, %p173
      %p175 = pneg %p174
      // Predicated region
      $region9: #{channel_attention.1} parent=5 // pred_check
        _
      $region10: #{channel_attention.1} parent=5 // pred_check_branch
        %177 = sbr.rel (%p174) target = $region12
      $region11: #{channel_attention.1} parent=5 // pred_region
        %s178 = ssub.s32 %s14, 1
        // Predicated region
        $region13: #{channel_attention.1} parent=11 // pred_check
          %p179 = pneg %p75
        $region14: #{channel_attention.1} parent=11 // pred_check_branch
          %181 = sbr.rel (%p179) target = $region16
        $region15: #{channel_attention.1} parent=11 // pred_region
          _
        $region16: #{channel_attention.1} parent=11 // pred_fallthru
          _
        // Predicated region
        $region17: #{channel_attention.1} parent=11 // pred_check
          %p182 = pneg %p96
        $region18: #{channel_attention.1} parent=11 // pred_check_branch
          %184 = sbr.rel (%p182) target = $region20
        $region19: #{channel_attention.1} parent=11 // pred_region
          _
        $region20: #{channel_attention.1} parent=11 // pred_fallthru
          _
        // Predicated region
        $region21: #{channel_attention.1} parent=11 // pred_check
          %p185 = pneg %p117
        $region22: #{channel_attention.1} parent=11 // pred_check_branch
          %187 = sbr.rel (%p185) target = $region24
        $region23: #{channel_attention.1} parent=11 // pred_region
          _
        $region24: #{channel_attention.1} parent=11 // pred_fallthru
          _
        // Predicated region
        $region25: #{channel_attention.1} parent=11 // pred_check
          %p188 = pneg %p138
        $region26: #{channel_attention.1} parent=11 // pred_check_branch
          %190 = sbr.rel (%p188) target = $region28
        $region27: #{channel_attention.1} parent=11 // pred_region
          _
        $region28: #{channel_attention.1} parent=11 // pred_fallthru
          _
      $region12: #{channel_attention.1} parent=5 // pred_fallthru
        _
      %p191 = scmp.lt.s32.totalorder %s14, 2
      // Predicated region
      $region29: #{channel_attention.1} parent=5 // pred_check
        %p192 = pneg %p191
      $region30: #{channel_attention.1} parent=5 // pred_check_branch
        %194 = sbr.rel (%p192) target = $region32
      $region31: #{channel_attention.1} parent=5 // pred_region
        // Predicated region
        $region33: #{channel_attention.1} parent=31 // pred_check
          %p195 = pneg %p48
        $region34: #{channel_attention.1} parent=31 // pred_check_branch
          %197 = sbr.rel (%p195) target = $region36
        $region35: #{channel_attention.1} parent=31 // pred_region
          %p198 = scmp.lt.s32.totalorder %s21, 1
          %s199 = scalar_select %p198, %s21, 1
          %p200 = scmp.lt.s32.totalorder %s22, 0
          %s201 = scalar_select %p200, %s22, 0
          %s202 = smul.addr %s199, 8
          %s203 = sadd.s32 %s201, %s202
          %s204 = smul.addr %s203, 8
          %s205 = scalar_lea.vmem %s0, %s204
        $region36: #{channel_attention.1} parent=31 // pred_fallthru
          _
      $region32: #{channel_attention.1} parent=5 // pred_fallthru
        _
      %p206 = scmp.le.s32.totalorder 1, %s14
      %p207 = scmp.lt.s32.totalorder %s14, 3
      %p208 = pnand %p206, %p207
      %p209 = pneg %p208
      // Predicated region
      $region37: #{channel_attention.1} parent=5 // pred_check
        _
      $region38: #{channel_attention.1} parent=5 // pred_check_branch
        %211 = sbr.rel (%p208) target = $region40
      $region39: #{channel_attention.1} parent=5 // pred_region
        %s212 = ssub.s32 %s14, 1
        %p213 = scmp.lt.s32.totalorder %s23, 1
        %s214 = scalar_select %p213, %s23, 1
        %p215 = scmp.lt.s32.totalorder %s24, 0
        %s216 = scalar_select %p215, %s24, 0
        %s217 = smul.addr %s214, 8
        %s218 = sadd.s32 %s216, %s217
        %s219 = smul.addr %s218, 8
        %s220 = scalar_lea.vmem %s0, %s219
        %p221 = pneg %p54
        %p222 = pneg %p51
        %p223 = pneg %p75
        %p224 = pneg %p72
        %p225 = pneg %p96
        %p226 = pneg %p93
        %p227 = pneg %p117
        %p228 = pneg %p114
        %p229 = pneg %p138
        %p230 = pneg %p135
        %p231 = pneg %p164
        %p232 = pneg %p161
        %s233 = sand.u32 %s151, 1
        %s234 = scalar_lea.sflag [#allocation4], %s233
        %s235 = sand.u32 %s151, 1
        %s236 = scalar_lea.vmem [#allocation3], %s235
        %p237 = scmp.lt.s32.totalorder %s23, 1
        %s238 = scalar_select %p237, %s23, 1
        %p239 = scmp.lt.s32.totalorder %s24, 0
        %s240 = scalar_select %p239, %s24, 0
        %s241 = smul.addr %s238, 8
        %s242 = sadd.s32 %s240, %s241
        %s243 = smul.addr %s242, 8
        %s244 = scalar_lea.vmem %s0, %s243
        %p245 = scmp.eq.s32.totalorder %s24, 0
        // Predicated region
        $region41: #{channel_attention.1} parent=39 // pred_check
          %p246 = pneg %p245
        $region42: #{channel_attention.1} parent=39 // pred_check_branch
          %248 = sbr.rel (%p246) target = $region44
        $region43: #{channel_attention.1} parent=39 // pred_region
          %vm249 = vcmask 130048
          %250 = vst.msk [vmem:[#allocation2] sm:$0xff] %vm249, 0.0
          %251 = vst.msk [vmem:[#allocation2 + $0x8] sm:$0xff] %vm249, 0.0
          %252 = vst.msk [vmem:[#allocation2 + $0x10] sm:$0xff] %vm249, 0.0
          %253 = vst.msk [vmem:[#allocation2 + $0x18] sm:$0xff] %vm249, 0.0
          %254 = vst.msk [vmem:[#allocation2 + $0x20] sm:$0xff] %vm249, 0.0
          %255 = vst.msk [vmem:[#allocation2 + $0x28] sm:$0xff] %vm249, 0.0
          %256 = vst.msk [vmem:[#allocation2 + $0x30] sm:$0xff] %vm249, 0.0
          %257 = vst.msk [vmem:[#allocation2 + $0x38] sm:$0xff] %vm249, 0.0
        $region44: #{channel_attention.1} parent=39 // pred_fallthru
          _
        %v258 = vld [vmem:[#allocation2] sm:$0xff]
        %v259 = vld [vmem:[#allocation2 + $0x8] sm:$0xff]
        %v260 = vld [vmem:[#allocation2 + $0x10] sm:$0xff]
        %v261 = vld [vmem:[#allocation2 + $0x18] sm:$0xff]
        %v262 = vld [vmem:[#allocation2 + $0x20] sm:$0xff]
        %v263 = vld [vmem:[#allocation2 + $0x28] sm:$0xff]
        %v264 = vld [vmem:[#allocation2 + $0x30] sm:$0xff]
        %v265 = vld [vmem:[#allocation2 + $0x38] sm:$0xff]
        %v266 = vld [vmem:[%s244] sm:$0xff]
        %v267 = vld [vmem:[%s244 + $0x8] sm:$0xff]
        %v268 = vld [vmem:[%s244 + $0x10] sm:$0xff]
        %v269 = vld [vmem:[%s244 + $0x18] sm:$0xff]
        %v270 = vld [vmem:[%s244 + $0x20] sm:$0xff]
        %v271 = vld [vmem:[%s244 + $0x28] sm:$0xff]
        %v272 = vld [vmem:[%s244 + $0x30] sm:$0xff]
        %v273 = vld [vmem:[%s244 + $0x38] sm:$0xff]
        %v274 = vadd.f32 %v258, %v266
        %v275 = vadd.f32 %v259, %v267
        %v276 = vadd.f32 %v260, %v268
        %v277 = vadd.f32 %v261, %v269
        %v278 = vadd.f32 %v262, %v270
        %v279 = vadd.f32 %v263, %v271
        %v280 = vadd.f32 %v264, %v272
        %v281 = vadd.f32 %v265, %v273
        %vm282 = vcmask 130048
        %283 = vst.msk [vmem:[#allocation2] sm:$0xff] %vm282, %v274
        %284 = vst.msk [vmem:[#allocation2 + $0x8] sm:$0xff] %vm282, %v275
        %285 = vst.msk [vmem:[#allocation2 + $0x10] sm:$0xff] %vm282, %v276
        %286 = vst.msk [vmem:[#allocation2 + $0x18] sm:$0xff] %vm282, %v277
        %287 = vst.msk [vmem:[#allocation2 + $0x20] sm:$0xff] %vm282, %v278
        %288 = vst.msk [vmem:[#allocation2 + $0x28] sm:$0xff] %vm282, %v279
        %289 = vst.msk [vmem:[#allocation2 + $0x30] sm:$0xff] %vm282, %v280
        %290 = vst.msk [vmem:[#allocation2 + $0x38] sm:$0xff] %vm282, %v281
        // Predicated region
        $region45: #{channel_attention.1} parent=39 // pred_check
          %p291 = pneg %p245
        $region46: #{channel_attention.1} parent=39 // pred_check_branch
          %293 = sbr.rel (%p291) target = $region48
        $region47: #{channel_attention.1} parent=39 // pred_region
          %v294 = vld [vmem:[#allocation2] sm:$0xff]
          %v295 = vld [vmem:[#allocation2 + $0x8] sm:$0xff]
          %v296 = vld [vmem:[#allocation2 + $0x10] sm:$0xff]
          %v297 = vld [vmem:[#allocation2 + $0x18] sm:$0xff]
          %v298 = vld [vmem:[#allocation2 + $0x20] sm:$0xff]
          %v299 = vld [vmem:[#allocation2 + $0x28] sm:$0xff]
          %v300 = vld [vmem:[#allocation2 + $0x30] sm:$0xff]
          %v301 = vld [vmem:[#allocation2 + $0x38] sm:$0xff]
          %v302 = vsel %vm282, %v294, 0.0
          %303 = vadd.xlane.f32.xlu0 %v302
          %v304 = vpop.xlane.xlu0 %303
          %v305 = vsel %vm282, %v295, 0.0
          %306 = vadd.xlane.f32.xlu0 %v305
          %v307 = vpop.xlane.xlu0 %306
          %v308 = vsel %vm282, %v296, 0.0
          %309 = vadd.xlane.f32.xlu0 %v308
          %v310 = vpop.xlane.xlu0 %309
          %v311 = vsel %vm282, %v297, 0.0
          %312 = vadd.xlane.f32.xlu0 %v311
          %v313 = vpop.xlane.xlu0 %312
          %v314 = vsel %vm282, %v298, 0.0
          %315 = vadd.xlane.f32.xlu0 %v314
          %v316 = vpop.xlane.xlu0 %315
          %v317 = vsel %vm282, %v299, 0.0
          %318 = vadd.xlane.f32.xlu0 %v317
          %v319 = vpop.xlane.xlu0 %318
          %v320 = vsel %vm282, %v300, 0.0
          %321 = vadd.xlane.f32.xlu0 %v320
          %v322 = vpop.xlane.xlu0 %321
          %v323 = vsel %vm282, %v301, 0.0
          %324 = vadd.xlane.f32.xlu0 %v323
          %v325 = vpop.xlane.xlu0 %324
          %v326 = vmul.f32 %v304, 0.0625
          %v327 = vmul.f32 %v307, 0.0625
          %v328 = vmul.f32 %v310, 0.0625
          %v329 = vmul.f32 %v313, 0.0625
          %v330 = vmul.f32 %v316, 0.0625
          %v331 = vmul.f32 %v319, 0.0625
          %v332 = vmul.f32 %v322, 0.0625
          %v333 = vmul.f32 %v325, 0.0625
          %v334 = vld [vmem:[%s1] sm:$0xff]
          %v335 = vld [vmem:[%s2] sm:$0x1]
          %v344 = vlaneseq
          %v345 = vand.u32 %v344, 127
          %v346 = vlaneseq
          %v347 = vshrl.u32 %v346, 7
          %v348 = vsub.s32 %v345, %v347
          %v349 = vrot.slane %v326, %v348
          %v350 = vadd.s32 %v345, 4294967288
          %v351 = vlaneseq
          %v352 = vshrl.u32 %v351, 7
          %v353 = vsub.s32 %v350, %v352
          %v354 = vrot.slane %v327, %v353
          %vm355 = vcmask 130112
          %v356 = vsel %vm355, %v354, %v349
          %v357 = vadd.s32 %v345, 4294967280
          %v358 = vlaneseq
          %v359 = vshrl.u32 %v358, 7
          %v360 = vsub.s32 %v357, %v359
          %v361 = vrot.slane %v328, %v360
          %vm362 = vcmask 195712
          %v363 = vsel %vm362, %v361, %v356
          %v364 = vadd.s32 %v345, 4294967272
          %v365 = vlaneseq
          %v366 = vshrl.u32 %v365, 7
          %v367 = vsub.s32 %v364, %v366
          %v368 = vrot.slane %v329, %v367
          %vm369 = vcmask 261312
          %v370 = vsel %vm369, %v368, %v363
          %v371 = vadd.s32 %v345, 4294967264
          %v372 = vlaneseq
          %v373 = vshrl.u32 %v372, 7
          %v374 = vsub.s32 %v371, %v373
          %v375 = vrot.slane %v330, %v374
          %vm376 = vcmask 326912
          %v377 = vsel %vm376, %v375, %v370
          %v378 = vadd.s32 %v345, 4294967256
          %v379 = vlaneseq
          %v380 = vshrl.u32 %v379, 7
          %v381 = vsub.s32 %v378, %v380
          %v382 = vrot.slane %v331, %v381
          %vm383 = vcmask 392512
          %v384 = vsel %vm383, %v382, %v377
          %v385 = vadd.s32 %v345, 4294967248
          %v386 = vlaneseq
          %v387 = vshrl.u32 %v386, 7
          %v388 = vsub.s32 %v385, %v387
          %v389 = vrot.slane %v332, %v388
          %vm390 = vcmask 458112
          %v391 = vsel %vm390, %v389, %v384
          %v392 = vadd.s32 %v345, 4294967240
          %v393 = vlaneseq
          %v394 = vshrl.u32 %v393, 7
          %v395 = vsub.s32 %v392, %v394
          %v396 = vrot.slane %v333, %v395
          %vm397 = vcmask 523712
          %v398 = vsel %vm397, %v396, %v391
          %vm399 = vcmask 523264
          %v400 = vsel %vm399, %v398, 0
          %v403 = vsel %vm399, %v334, 0
          %405 = vmatprep.subr.mxu0 0.0
          %406 = vmatpush1.xpose.msra.mxu0 %v403
          %407 = vmatprep.subr.mxu0 0.0
          %408 = vmatpush1.xpose.msra.mxu0 0.0
          %409 = vmatprep.subr.mxu0 0.0
          %410 = vmatpush1.xpose.msra.mxu0 0.0
          %411 = vmatprep.subr.mxu0 0.0
          %412 = vmatpush1.xpose.msra.mxu0 0.0
          %413 = vmatprep.subr.mxu0 0.0
          %414 = vmatpush1.xpose.msra.mxu0 0.0
          %415 = vmatprep.subr.mxu0 0.0
          %416 = vmatpush1.xpose.msra.mxu0 0.0
          %417 = vmatprep.subr.mxu0 0.0
          %418 = vmatpush1.xpose.msra.mxu0 0.0
          %419 = vmatprep.subr.mxu0 0.0
          %420 = vmatpush1.xpose.msra.mxu0 0.0
          %421 = vmatprep.subr.mxu0 0.0
          %422 = vmatpush1.xpose.msra.mxu0 0.0
          %423 = vmatprep.subr.mxu0 0.0
          %424 = vmatpush1.xpose.msra.mxu0 0.0
          %425 = vmatprep.subr.mxu0 0.0
          %426 = vmatpush1.xpose.msra.mxu0 0.0
          %427 = vmatprep.subr.mxu0 0.0
          %428 = vmatpush1.xpose.msra.mxu0 0.0
          %429 = vmatprep.subr.mxu0 0.0
          %430 = vmatpush1.xpose.msra.mxu0 0.0
          %431 = vmatprep.subr.mxu0 0.0
          %432 = vmatpush1.xpose.msra.mxu0 0.0
          %433 = vmatprep.subr.mxu0 0.0
          %434 = vmatpush1.xpose.msra.mxu0 0.0
          %435 = vmatprep.subr.mxu0 0.0
          %436 = vmatpush1.xpose.msra.mxu0 0.0
          %437 = vmatprep.subr.mxu0 0.0
          %438 = vmatpush1.xpose.msra.mxu0 0.0
          %439 = vmatprep.subr.mxu0 0.0
          %440 = vmatpush1.xpose.msra.mxu0 0.0
          %441 = vmatprep.subr.mxu0 0.0
          %442 = vmatpush1.xpose.msra.mxu0 0.0
          %443 = vmatprep.subr.mxu0 0.0
          %444 = vmatpush1.xpose.msra.mxu0 0.0
          %445 = vmatprep.subr.mxu0 0.0
          %446 = vmatpush1.xpose.msra.mxu0 0.0
          %447 = vmatprep.subr.mxu0 0.0
          %448 = vmatpush1.xpose.msra.mxu0 0.0
          %449 = vmatprep.subr.mxu0 0.0
          %450 = vmatpush1.xpose.msra.mxu0 0.0
          %451 = vmatprep.subr.mxu0 0.0
          %452 = vmatpush1.xpose.msra.mxu0 0.0
          %453 = vmatprep.subr.mxu0 0.0
          %454 = vmatpush1.xpose.msra.mxu0 0.0
          %455 = vmatprep.subr.mxu0 0.0
          %456 = vmatpush1.xpose.msra.mxu0 0.0
          %457 = vmatprep.subr.mxu0 0.0
          %458 = vmatpush1.xpose.msra.mxu0 0.0
          %459 = vmatprep.subr.mxu0 0.0
          %460 = vmatpush1.xpose.msra.mxu0 0.0
          %461 = vmatprep.subr.mxu0 0.0
          %462 = vmatpush1.xpose.msra.mxu0 0.0
          %463 = vmatprep.subr.mxu0 0.0
          %464 = vmatpush1.xpose.msra.mxu0 0.0
          %465 = vmatprep.subr.mxu0 0.0
          %466 = vmatpush1.xpose.msra.mxu0 0.0
          %467 = vmatprep.subr.mxu0 0.0
          %468 = vmatpush1.xpose.msra.mxu0 0.0
          %469 = vmatprep.mubr.f32.mxu0 0.0
          %470 = vmatmul.mubr.f32.gmra.mrb[0].mxu0 %v400
          %v471 = vpop.f32.mrb[0].mxu0
          %v472 = vadd.f32 %v335, %v471
          %v473 = vpop.f32.mrb[0].mxu0
          %474 = vdwg.mxu0
          %v475 = vld [vmem:[%s3] sm:$0xff]
          %v476 = vld [vmem:[%s4] sm:$0x1]
          %vm477 = vcmask 64512
          %v479 = vsel %vm477, %v472, 0
          %481 = vmatprep.subr.mxu0 0.0
          %482 = vmatpush1.msra.mxu0 %v475
          %483 = vmatprep.subr.mxu0 0.0
          %484 = vmatpush1.msra.mxu0 0.0
          %485 = vmatprep.subr.mxu0 0.0
          %486 = vmatpush1.msra.mxu0 0.0
          %487 = vmatprep.subr.mxu0 0.0
          %488 = vmatpush1.msra.mxu0 0.0
          %489 = vmatprep.subr.mxu0 0.0
          %490 = vmatpush1.msra.mxu0 0.0
          %491 = vmatprep.subr.mxu0 0.0
          %492 = vmatpush1.msra.mxu0 0.0
          %493 = vmatprep.subr.mxu0 0.0
          %494 = vmatpush1.msra.mxu0 0.0
          %495 = vmatprep.subr.mxu0 0.0
          %496 = vmatpush1.msra.mxu0 0.0
          %497 = vmatprep.subr.mxu0 0.0
          %498 = vmatpush1.msra.mxu0 0.0
          %499 = vmatprep.subr.mxu0 0.0
          %500 = vmatpush1.msra.mxu0 0.0
          %501 = vmatprep.subr.mxu0 0.0
          %502 = vmatpush1.msra.mxu0 0.0
          %503 = vmatprep.subr.mxu0 0.0
          %504 = vmatpush1.msra.mxu0 0.0
          %505 = vmatprep.subr.mxu0 0.0
          %506 = vmatpush1.msra.mxu0 0.0
          %507 = vmatprep.subr.mxu0 0.0
          %508 = vmatpush1.msra.mxu0 0.0
          %509 = vmatprep.subr.mxu0 0.0
          %510 = vmatpush1.msra.mxu0 0.0
          %511 = vmatprep.subr.mxu0 0.0
          %512 = vmatpush1.msra.mxu0 0.0
          %513 = vmatprep.subr.mxu0 0.0
          %514 = vmatpush1.msra.mxu0 0.0
          %515 = vmatprep.subr.mxu0 0.0
          %516 = vmatpush1.msra.mxu0 0.0
          %517 = vmatprep.subr.mxu0 0.0
          %518 = vmatpush1.msra.mxu0 0.0
          %519 = vmatprep.subr.mxu0 0.0
          %520 = vmatpush1.msra.mxu0 0.0
          %521 = vmatprep.subr.mxu0 0.0
          %522 = vmatpush1.msra.mxu0 0.0
          %523 = vmatprep.subr.mxu0 0.0
          %524 = vmatpush1.msra.mxu0 0.0
          %525 = vmatprep.subr.mxu0 0.0
          %526 = vmatpush1.msra.mxu0 0.0
          %527 = vmatprep.subr.mxu0 0.0
          %528 = vmatpush1.msra.mxu0 0.0
          %529 = vmatprep.subr.mxu0 0.0
          %530 = vmatpush1.msra.mxu0 0.0
          %531 = vmatprep.subr.mxu0 0.0
          %532 = vmatpush1.msra.mxu0 0.0
          %533 = vmatprep.subr.mxu0 0.0
          %534 = vmatpush1.msra.mxu0 0.0
          %535 = vmatprep.subr.mxu0 0.0
          %536 = vmatpush1.msra.mxu0 0.0
          %537 = vmatprep.subr.mxu0 0.0
          %538 = vmatpush1.msra.mxu0 0.0
          %539 = vmatprep.subr.mxu0 0.0
          %540 = vmatpush1.msra.mxu0 0.0
          %541 = vmatprep.subr.mxu0 0.0
          %542 = vmatpush1.msra.mxu0 0.0
          %543 = vmatprep.subr.mxu0 0.0
          %544 = vmatpush1.msra.mxu0 0.0
          %545 = vmatprep.mubr.f32.mxu0 0.0
          %546 = vmatmul.mubr.f32.gmra.mrb[0].mxu0 %v479
          %v547 = vpop.f32.mrb[0].mxu0
          %v548 = vadd.f32 %v476, %v547
          %v549 = vpop.f32.mrb[0].mxu0
          %550 = vdwg.mxu0
          %vm551 = vcmask 516096
          %552 = vst.msk [vmem:[%s236] sm:$0x1] %vm551, %v548
        $region48: #{channel_attention.1} parent=39 // pred_fallthru
          _
        %s553 = sand.u32 %s151, 1
        %s554 = scalar_lea.sflag [#allocation4], %s553
        %s555 = sand.u32 %s151, 1
        %s556 = scalar_lea.vmem [#allocation3], %s555
        // Predicated region
        $region49: #{channel_attention.1} parent=39 // pred_check
          %p557 = pneg %p161
        $region50: #{channel_attention.1} parent=39 // pred_check_branch
          %559 = sbr.rel (%p557) target = $region52
        $region51: #{channel_attention.1} parent=39 // pred_region
          %s561 = ssub.s32 16, 16
          %562 = vsyncadd %s554, %s561
          %s563 = smul.addr %s23, 16
          %s564 = scalar_lea.hbm %s5, %s563
          %s566 = sshll.u32 %s556, 4
          %s567 = int_to_ptr.vmem [resolvable:$true] %s566
          %569 = dma.vmem_to_hbm [thread:$0]  %s567, 16, %s564, %s554
        $region52: #{channel_attention.1} parent=39 // pred_fallthru
          _
      $region40: #{channel_attention.1} parent=5 // pred_fallthru
        _
      %p570 = scmp.le.s32.totalorder 2, %s14
      // Predicated region
      $region53: #{channel_attention.1} parent=5 // pred_check
        %p571 = pneg %p570
      $region54: #{channel_attention.1} parent=5 // pred_check_branch
        %573 = sbr.rel (%p571) target = $region56
      $region55: #{channel_attention.1} parent=5 // pred_region
        %s574 = ssub.s32 %s14, 2
        // Predicated region
        $region57: #{channel_attention.1} parent=55 // pred_check
          %p575 = pneg %p167
        $region58: #{channel_attention.1} parent=55 // pred_check_branch
          %577 = sbr.rel (%p575) target = $region60
        $region59: #{channel_attention.1} parent=55 // pred_region
          %s578 = sand.u32 %s152, 1
          %s579 = scalar_lea.sflag [#allocation4], %s578
          %s580 = sand.u32 %s152, 1
          %s581 = scalar_lea.vmem [#allocation3], %s580
          %582 = dma.done %s579, 16
        $region60: #{channel_attention.1} parent=55 // pred_fallthru
          _
      $region56: #{channel_attention.1} parent=5 // pred_fallthru
        _
    $region6: #{channel_attention.1} parent=1 // loop_footer
      %s18 = sadd.s32 1, %s14
    $region7: #{channel_attention.1} parent=1 // loop_footer_branch
      %13 = sbr.rel target = $region3
    $region8: #{channel_attention.1} parent=1 // loop_exit
      _
    %583 = vsyncpa [#allocation4], 1
    %s584 = scalar_lea.sflag [#allocation4], 1
    %585 = vsyncpa %s584, 1

</llo_original>
